<compile_context>
chip_gen: v5e
topology: v5e:2x2
jax: 0.10.0
libtpu: 0.0.40
codegen_flags: <defaults>
</compile_context>

<pallas_src>
import functools

import jax
import jax.numpy as jnp
import numpy as np
from jax.experimental import pallas as pl
from jax.experimental.pallas import tpu as pltpu


def _round_up(x, m):
    return ((x + m - 1) // m) * m


def _tpu_runtime_info():
    """Best-effort (physical VMEM bytes, TensorCores per chip) with safe fallbacks."""
    vmem_phys = None
    num_tc = None
    try:
        info = pltpu.get_tpu_info()
        for name in ("vmem_capacity_bytes", "vmem_bytes", "vmem_size_bytes"):
            v = getattr(info, name, None)
            if isinstance(v, (int, np.integer)) and v > 0:
                vmem_phys = int(v)
                break
        for name in ("num_cores", "num_tensorcores", "tensorcore_count", "core_count"):
            v = getattr(info, name, None)
            if isinstance(v, (int, np.integer)) and v > 0:
                num_tc = int(v)
                break
    except Exception:
        pass
    kind = ""
    try:
        kind = jax.devices()[0].device_kind.lower()
    except Exception:
        pass
    is_v7 = ("v7" in kind) or ("7x" in kind)
    if vmem_phys is None:
        vmem_phys = (64 if is_v7 else 128) * 1024 * 1024
    if num_tc is None:
        num_tc = 2 if (is_v7 or "v4" in kind or "v5p" in kind) else 1
    return vmem_phys, num_tc


def _pick_images_per_block(n, per_image_bytes, block_budget_bytes, num_tc,
                           sublane_multiple=1, max_images_per_block=None):
    """Images per grid step.

    `per_image_bytes` is the *padded* (8,128)-tiled VMEM footprint of one image's
    input + output rows; `block_budget_bytes` already reserves room for the
    double-buffered blocks and in-kernel temporaries (~5x one block).  On
    2-TensorCore chips keep >= 2 grid steps (preferably an even count) so the
    megacore split stays balanced; on 1-TC chips a grid of length 1 is best when
    the batch fits.
    """
    cap = max(1, block_budget_bytes // max(1, per_image_bytes))
    if max_images_per_block is not None:
        cap = min(cap, max(1, int(max_images_per_block)))
    nb = min(cap, n)
    if num_tc >= 2 and n > 1:
        nb = min(nb, (n + 1) // 2)                      # at least 2 grid steps
        for cand in range(nb, max(0, nb // 2 - 1), -1):  # prefer an even step count
            if (-(-n // cand)) % 2 == 0:                 # bounded to ~2x block shrink
                nb = cand
                break
    if sublane_multiple > 1 and nb < n:
        # Flat layout: the batch dim is the sublane dim of a 2-D block, so the
        # block height must be a multiple of 8 or the whole batch.
        nb_r = (nb // sublane_multiple) * sublane_multiple
        nb = nb_r if nb_r > 0 else min(n, sublane_multiple)
    return max(1, min(nb, n))


def _stencil_flat_kernel(x_ref, o_ref, *, shift_taps, out_len, final_scale):
    """Lane-dense stencil: each image is one lane row of length H*W; every tap is
    a constant lane shift.  Block shapes: x (NB, H*W), o (NB, out_len)."""
    x = x_ref[...]
    if x.dtype != jnp.float32:
        x = x.astype(jnp.float32)
    acc = None
    for s, wgt in shift_taps:                           # fixed filter -> immediates
        sl = x[:, s:s + out_len]
        if acc is None:
            acc = sl if wgt == 1.0 else (-sl if wgt == -1.0 else wgt * sl)
        elif wgt == 1.0:
            acc = acc + sl                              # +-1 taps: no multiply
        elif wgt == -1.0:
            acc = acc - sl
        else:
            acc = acc + wgt * sl
    if acc is None:                                     # degenerate all-zero filter
        acc = jnp.zeros(o_ref.shape, jnp.float32)
    if final_scale != 1.0:
        acc = acc * final_scale                         # single deferred 1/resol scale
    o_ref[...] = acc.astype(o_ref.dtype)


def _stencil_nat_kernel(x_ref, o_ref, *, taps, kernel_size, h_out, w_out, final_scale):
    """Natural-layout stencil for wider images (W already lane-dense enough).
    Fused per-dx accumulation: at most one full-width column sum live at a time."""
    x = x_ref[...]                                      # (NB, H, W)
    if x.dtype != jnp.float32:
        x = x.astype(jnp.float32)
    k = kernel_size
    acc = None
    for dx in range(k):
        col = None
        for dy in range(k):
            wgt = taps[dy][dx]
            if wgt == 0.0:                              # fixed filter -> static skip
                continue
            rows = x[:, dy:dy + h_out, :]               # sublane slice, lane-aligned
            if col is None:
                col = rows if wgt == 1.0 else (-rows if wgt == -1.0 else wgt * rows)
            elif wgt == 1.0:
                col = col + rows
            elif wgt == -1.0:
                col = col - rows
            else:
                col = col + wgt * rows
        if col is None:
            continue
        piece = col[:, :, dx:dx + w_out]                # one lane realignment per dx
        acc = piece if acc is None else acc + piece
    if acc is None:
        acc = jnp.zeros(o_ref.shape, jnp.float32)
    if final_scale != 1.0:
        acc = acc * final_scale
    o_ref[...] = acc.astype(o_ref.dtype)


def conv2d_derivative(x_nchw, der_filter, resol, kernel_size=3,
                      max_images_per_block=None):
    """Pallas TPU equivalent of Conv2dDerivative.forward.

    x_nchw:     (N, 1, H, W) array (float32 in the reference model).
    der_filter: (1, 1, k, k) fixed, non-trainable stencil; weights are read on the
                host and baked into the kernel as Python immediates.
    resol:      Python scalar; output = conv(x, filter) / resol.
    Returns:    (N, 1, H-k+1, W-k+1).
    """
    n, c, h, w = x_nchw.shape
    assert c == 1, "Conv2dDerivative has a single input channel"
    k = int(kernel_size)
    h_out, w_out = h - k + 1, w - k + 1
    assert h_out >= 1 and w_out >= 1
    dtype = x_nchw.dtype

    # ---- fixed filter -> immediates; decide where the 1/resol scale goes -------
    wraw = np.asarray(jax.device_get(der_filter), dtype=np.float64).reshape(k, k)
    scale = 1.0 / float(resol)
    nz = [(dy, dx, float(wraw[dy, dx])) for dy in range(k) for dx in range(k)
          if float(wraw[dy, dx]) != 0.0]
    muls_folded = len(nz)                               # fold scale -> every tap multiplies
    muls_deferred = sum(1 for _, _, v in nz if abs(v) != 1.0) + (0 if scale == 1.0 else 1)
    if muls_deferred <= muls_folded:
        taps_list, final_scale = nz, scale              # keep +-1 taps multiply-free
    else:
        taps_list, final_scale = [(dy, dx, v * scale) for dy, dx, v in nz], 1.0

    # ---- generation-aware VMEM budget ------------------------------------------
    vmem_phys, num_tc = _tpu_runtime_info()
    vmem_limit = int(min(64 * 1024 * 1024, int(vmem_phys * 0.7)))
    block_budget = min(8 * 1024 * 1024, vmem_limit // 5)  # 2x in + 2x out + temporaries

    itemsize = 4                                        # blocks / compute are f32
    flat_len = h * w
    out_len = (h_out - 1) * w + w_out                   # flat output length (in bounds)
    per_img_flat = itemsize * (_round_up(flat_len, 128) + _round_up(out_len, 128))
    per_img_nat = itemsize * (_round_up(h, 8) * _round_up(w, 128)
                              + _round_up(h_out, 8) * _round_up(w_out, 128))

    # Lane-packed flat path only pays off when W wastes most of the 128 lanes.
    use_flat = (w <= 64) and (min(n, 8) * per_img_flat <= 2 * block_budget)

    params = pltpu.CompilerParams(
        dimension_semantics=("parallel",),              # batch blocks are independent
        vmem_limit_bytes=vmem_limit,
    )

    if use_flat:
        nb = _pick_images_per_block(n, per_img_flat, block_budget, num_tc,
                                    sublane_multiple=8,
                                    max_images_per_block=max_images_per_block)
        shift_taps = tuple(sorted((dy * w + dx, v) for dy, dx, v in taps_list))
        kernel = functools.partial(_stencil_flat_kernel, shift_taps=shift_taps,
                                   out_len=out_len, final_scale=final_scale)
        x_flat = x_nchw.reshape(n, flat_len)            # contiguous -> pure reshape
        out_flat = pl.pallas_call(
            kernel,
            out_shape=jax.ShapeDtypeStruct((n, out_len), dtype),
            grid_spec=pltpu.PrefetchScalarGridSpec(
                num_scalar_prefetch=0,
                grid=(pl.cdiv(n, nb),),
                in_specs=[pl.BlockSpec((nb, flat_len), lambda b: (b, 0))],
                out_specs=pl.BlockSpec((nb, out_len), lambda b: (b, 0)),
            ),
            compiler_params=params,
        )(x_flat)
        # Unpack: flat index i*W + j -> (i, j); drop the k-1 garbage columns.
        out = jnp.pad(out_flat, ((0, 0), (0, h_out * w - out_len)))
        out = out.reshape(n, h_out, w)[:, :, :w_out]
        return out.reshape(n, 1, h_out, w_out)

    # Natural-layout path (W already reasonably lane-dense).
    nb = _pick_images_per_block(n, per_img_nat, block_budget, num_tc,
                                sublane_multiple=1,
                                max_images_per_block=max_images_per_block)
    taps_nat = [[0.0] * k for _ in range(k)]
    for dy, dx, v in taps_list:
        taps_nat[dy][dx] = v
    taps_nat = tuple(tuple(r) for r in taps_nat)
    kernel = functools.partial(_stencil_nat_kernel, taps=taps_nat, kernel_size=k,
                               h_out=h_out, w_out=w_out, final_scale=final_scale)
    x3 = x_nchw.reshape(n, h, w)                        # squeeze singleton channel
    out = pl.pallas_call(
        kernel,
        out_shape=jax.ShapeDtypeStruct((n, h_out, w_out), dtype),
        grid_spec=pltpu.PrefetchScalarGridSpec(
            num_scalar_prefetch=0,
            grid=(pl.cdiv(n, nb),),
            in_specs=[pl.BlockSpec((nb, h, w), lambda b: (b, 0, 0))],
            out_specs=pl.BlockSpec((nb, h_out, w_out), lambda b: (b, 0, 0)),
        ),
        compiler_params=params,
    )(x3)
    return out.reshape(n, 1, h_out, w_out)              # restore NCHW


def _reference(x_nchw, der_filter, resol, kernel_size=3):
    """Pure-jnp shifted-window reference (matches PyTorch cross-correlation conv2d)."""
    n, _, h, w = x_nchw.shape
    k = kernel_size
    h_out, w_out = h - k + 1, w - k + 1
    xs = x_nchw[:, 0].astype(jnp.float32)
    wgt = jnp.asarray(der_filter, jnp.float32).reshape(k, k)
    acc = jnp.zeros((n, h_out, w_out), jnp.float32)
    for dy in range(k):
        for dx in range(k):
            acc = acc + wgt[dy, dx] * xs[:, dy:dy + h_out, dx:dx + w_out]
    return (acc / resol)[:, None, :, :]


if __name__ == "__main__":
    key = jax.random.PRNGKey(0)

    # Classic Laplacian derivative stencil, shape (1, 1, 3, 3), matching
    # nn.Conv2d(1, 1, 3, bias=False).weight of the original module.
    der_filter = jnp.array(
        [[[[0.0, 1.0, 0.0],
           [1.0, -4.0, 1.0],
           [0.0, 1.0, 0.0]]]],
        dtype=jnp.float32,
    )
    resol = 0.1 ** 2   # e.g. dx^2 for a Laplacian

    k1, k2, k3, k4 = jax.random.split(key, 4)

    # Case 1: small batch of small images -> lane-packed flat path, single block.
    x1 = jax.random.normal(k1, (2, 1, 16, 16), dtype=jnp.float32)
    out1 = jax.block_until_ready(conv2d_derivative(x1, der_filter, resol, kernel_size=3))
    ref1 = _reference(x1, der_filter, resol, kernel_size=3)
    assert out1.shape == (2, 1, 14, 14)
    assert jnp.allclose(out1, ref1, atol=1e-4, rtol=1e-5)

    # Case 2: larger batch, still the flat lane-dense path.
    x2 = jax.random.normal(k2, (4, 1, 16, 16), dtype=jnp.float32)
    out2 = jax.block_until_ready(conv2d_derivative(x2, der_filter, resol, kernel_size=3))
    ref2 = _reference(x2, der_filter, resol, kernel_size=3)
    assert out2.shape == (4, 1, 14, 14)
    assert jnp.allclose(out2, ref2, atol=1e-4, rtol=1e-5)

    # Case 3: wider image (W > 64) -> natural-layout path.
    x3 = jax.random.normal(k3, (2, 1, 16, 72), dtype=jnp.float32)
    out3 = jax.block_until_ready(conv2d_derivative(x3, der_filter, resol, kernel_size=3))
    ref3 = _reference(x3, der_filter, resol, kernel_size=3)
    assert out3.shape == (2, 1, 14, 70)
    assert jnp.allclose(out3, ref3, atol=1e-4, rtol=1e-5)

    # Case 4: batch that does not divide the block size -> multi-step grid with a
    # ragged last block (relaxed 'nb divides N' rule).
    x4 = jax.random.normal(k4, (20, 1, 16, 16), dtype=jnp.float32)
    out4 = jax.block_until_ready(
        conv2d_derivative(x4, der_filter, resol, kernel_size=3, max_images_per_block=8))
    ref4 = _reference(x4, der_filter, resol, kernel_size=3)
    assert out4.shape == (20, 1, 14, 14)
    assert jnp.allclose(out4, ref4, atol=1e-4, rtol=1e-5)

    print("KERNEL_OK")
</pallas_src>

<mosaic_0001>
module attributes {stable_mosaic.version = 11 : i64} {
  func.func @_stencil_flat_kernel(%arg0: i32, %arg1: memref<2x256xf32, #tpu.memory_space<vmem>>, %arg2: memref<2x222xf32, #tpu.memory_space<vmem>>) attributes {dimension_semantics = [#tpu.dimension_semantics<parallel>], iteration_bounds = array<i64: 1>, scalar_prefetch = 0 : i64, scratch_operands = 0 : i64, tpu.core_type = #tpu.core_type<tc>, window_params = [{transform_indices = @transform_0, window_bounds = array<i64: 2, 256>}, {transform_indices = @transform_1, window_bounds = array<i64: 2, 222>}]} {
    %c0 = arith.constant 0 : index
    %c0_0 = arith.constant 0 : index
    %0 = vector.load %arg1[%c0, %c0_0] : memref<2x256xf32, #tpu.memory_space<vmem>>, vector<2x256xf32>
    %1 = vector.extract_strided_slice %0 {offsets = [0, 1], sizes = [2, 222], strides = [1, 1]} : vector<2x256xf32> to vector<2x222xf32>
    %2 = vector.extract_strided_slice %0 {offsets = [0, 16], sizes = [2, 222], strides = [1, 1]} : vector<2x256xf32> to vector<2x222xf32>
    %3 = arith.addf %1, %2 : vector<2x222xf32>
    %4 = vector.extract_strided_slice %0 {offsets = [0, 17], sizes = [2, 222], strides = [1, 1]} : vector<2x256xf32> to vector<2x222xf32>
    %cst = arith.constant -4.000000e+00 : f32
    %5 = vector.broadcast %cst : f32 to vector<2x222xf32>
    %6 = arith.mulf %5, %4 : vector<2x222xf32>
    %7 = arith.addf %3, %6 : vector<2x222xf32>
    %8 = vector.extract_strided_slice %0 {offsets = [0, 18], sizes = [2, 222], strides = [1, 1]} : vector<2x256xf32> to vector<2x222xf32>
    %9 = arith.addf %7, %8 : vector<2x222xf32>
    %10 = vector.extract_strided_slice %0 {offsets = [0, 33], sizes = [2, 222], strides = [1, 1]} : vector<2x256xf32> to vector<2x222xf32>
    %11 = arith.addf %9, %10 : vector<2x222xf32>
    %cst_1 = arith.constant 1.000000e+02 : f32
    %12 = vector.broadcast %cst_1 : f32 to vector<2x222xf32>
    %13 = arith.mulf %11, %12 : vector<2x222xf32>
    %c0_2 = arith.constant 0 : index
    %c0_3 = arith.constant 0 : index
    %14 = vector.load %arg2[%c0_2, %c0_3] : memref<2x222xf32, #tpu.memory_space<vmem>>, vector<2x222xf32>
    tpu.vector_store %arg2[%c0_2, %c0_3], %13 {strides = array<i32>} : memref<2x222xf32, #tpu.memory_space<vmem>>, vector<2x222xf32>,
    return
  }
  func.func @transform_0(%arg0: i32) -> (i32, i32) {
    %c0_i32 = arith.constant 0 : i32
    %c0_i32_0 = arith.constant 0 : i32
    return %arg0, %c0_i32 : i32, i32
  }
  func.func @transform_1(%arg0: i32) -> (i32, i32) {
    %c0_i32 = arith.constant 0 : i32
    %c0_i32_0 = arith.constant 0 : i32
    return %arg0, %c0_i32 : i32, i32
  }
}

</mosaic_0001>

<llo_original>
// kernel: tpu_custom_call.1
$region0: #{tpu_custom_call.1}
  #allocation0 [shape = 'u32[]', space=smem, size = 0x4, offset = 0x4, fixed_abs, tag = 'smem constant byte address 0x4 - core index']
  #allocation1 [shape = 'u32[72,128]{1,0:T(1,128)}', space=vmem, size = 0x9000, scoped, tag = 'internal scratch']
  %s0 = inlined_call_operand.hbm [shape: f32[2,256], index: 0, kind: input, shape index: {}]
  %s1 = inlined_call_operand.hbm [shape: f32[2,222], index: 1, kind: output, shape index: {}]
  %s2 = sld [smem:[#allocation0]]
  $region18: #{tpu_custom_call.1} parent=0
    _
  %s4 = ssub.s32 1, %s2
  %s5 = scalar_select 0, %s4, %s2
  $region1: #{tpu_custom_call.1} parent=0
    #allocation2 [shape = 'u8[2048]{0}', space=vmem, size = 0x800, scoped, tag = 'input window, operand 0, single buffered']
    #allocation3 [shape = 's32[1]{0}', space=sflag, size = 0x4, scoped, tag = 'scoped memory for tpu_custom_call.1']
    #allocation4 [shape = 's32[1]{0}', space=sflag, size = 0x4, scoped, tag = 'scoped memory for tpu_custom_call.1']
    #allocation5 [shape = 'u8[2048]{0}', space=vmem, size = 0x800, scoped, tag = 'output window, operand 0, single buffered']
    %6 = vsyncpa [#allocation3], 0
    %7 = vsyncpa [#allocation4], 0
    // Predicated region
    $region2: #{tpu_custom_call.1} parent=1 // pred_check
      _
    $region3: #{tpu_custom_call.1} parent=1 // pred_check_branch
      %9 = sbr.rel (0) target = $region5
    $region4: #{tpu_custom_call.1} parent=1 // pred_region
      %11 = vsyncadd [#allocation3], 0
      %s13 = sshll.u32 %s0, 4
      %s14 = int_to_ptr.hbm [resolvable:$true] %s13
      %s15 = sshll.u32 [#allocation2], 4
      %s16 = int_to_ptr.vmem [resolvable:$true] %s15
      %18 = dma.hbm_to_vmem [thread:$0]  %s14, 64, %s16, [#allocation3]
    $region5: #{tpu_custom_call.1} parent=1 // pred_fallthru
      _
    // Predicated region
    $region6: #{tpu_custom_call.1} parent=1 // pred_check
      _
    $region7: #{tpu_custom_call.1} parent=1 // pred_check_branch
      %20 = sbr.rel (0) target = $region9
    $region8: #{tpu_custom_call.1} parent=1 // pred_region
      %22 = dma.done [#allocation3], 64
    $region9: #{tpu_custom_call.1} parent=1 // pred_fallthru
      _
    %v23 = vld [vmem:[#allocation2] sm:$0xf]
    %25 = vrot.lane.b32.xlu0 %v23, 113
    %v26 = vpop.permute.xlu0 %25
    %v27 = vrot.slane %v26, 2
    %vm28 = vcmask 924672
    %v29 = vsel %vm28, %v26, %v27
    %v31 = vadd.f32 %v23, %v29
    %v32 = vmul.f32 %v23, -4.0
    %34 = vrot.lane.b32.xlu0 %v32, 112
    %v35 = vpop.permute.xlu0 %34
    %v36 = vrot.slane %v35, 2
    %vm37 = vcmask 916480
    %v38 = vsel %vm37, %v35, %v36
    %v40 = vadd.f32 %v31, %v38
    %41 = vrot.lane.b32.xlu0 %v23, 111
    %v42 = vpop.permute.xlu0 %41
    %v43 = vrot.slane %v42, 2
    %vm44 = vcmask 908288
    %v45 = vsel %vm44, %v42, %v43
    %v47 = vadd.f32 %v40, %v45
    %48 = vrot.lane.b32.xlu0 %v23, 96
    %v49 = vpop.permute.xlu0 %48
    %v50 = vrot.slane %v49, 2
    %vm51 = vcmask 785408
    %v52 = vsel %vm51, %v49, %v50
    %v54 = vadd.f32 %v47, %v52
    %v55 = vmul.f32 %v54, 100.0
    %57 = vrot.lane.b32.xlu0 %v55, 127
    %v58 = vpop.permute.xlu0 %57
    %v59 = vrot.slane %v58, 2
    %vm60 = vcmask 1039360
    %v61 = vsel %vm60, %v58, %v59
    %vm63 = vcmask 1041408
    %vm64 = vcmask 764930
    %vm65 = vmor %vm64, %vm63
    %66 = vst.msk [vmem:[#allocation5] sm:$0xf] %vm65, %v61
    // Predicated region
    $region10: #{tpu_custom_call.1} parent=1 // pred_check
      _
    $region11: #{tpu_custom_call.1} parent=1 // pred_check_branch
      %68 = sbr.rel (0) target = $region13
    $region12: #{tpu_custom_call.1} parent=1 // pred_region
      %70 = vsyncadd [#allocation4], 0
      %s72 = sshll.u32 [#allocation5], 4
      %s73 = int_to_ptr.vmem [resolvable:$true] %s72
      %s74 = sshll.u32 %s1, 4
      %s75 = int_to_ptr.hbm [resolvable:$true] %s74
      %77 = dma.vmem_to_hbm [thread:$0]  %s73, 64, %s75, [#allocation4]
    $region13: #{tpu_custom_call.1} parent=1 // pred_fallthru
      _
    // Predicated region
    $region14: #{tpu_custom_call.1} parent=1 // pred_check
      _
    $region15: #{tpu_custom_call.1} parent=1 // pred_check_branch
      %79 = sbr.rel (0) target = $region17
    $region16: #{tpu_custom_call.1} parent=1 // pred_region
      %81 = dma.done [#allocation4], 64
    $region17: #{tpu_custom_call.1} parent=1 // pred_fallthru
      _
    %82 = vsyncpa [#allocation3], 1
    %83 = vsyncpa [#allocation4], 1

</llo_original>
